<compile_context>
chip_gen: v6e
topology: v6e:2x2x1
jax: 0.10.0
libtpu: 0.0.40
codegen_flags: <defaults>
</compile_context>

<pallas_src>
import functools

import jax
import jax.numpy as jnp
from jax.experimental import pallas as pl
from jax.experimental.pallas import tpu as pltpu


# ----------------------------- Pallas kernel --------------------------------

def _fused_metrical_gnn_kernel(x_ref, a_ref,
                               wc0_ref, bc0_ref, ws0_ref, bl0_ref,
                               wc1_ref, bc1_ref, ws1_ref, bl1_ref,
                               o_ref, *, num_etypes):
    """Fused: HeteroConv(Sage) -> l2norm -> relu -> HeteroConv(Sage)."""
    x = x_ref[...]                                   # (N, F_in)
    A = a_ref[...]                                   # (E, N, N) row-normalized

    def hetero_sage(h, wc_cat, bc_cat, ws_mean, bl_mean):
        # wc_cat : (f, E*H)  = concat_e(Wn_e @ Wnb_e) / E   (pre-folded)
        # bc_cat : (1, E*H)  = concat_e(bn_e @ Wnb_e) / E
        # ws_mean: (f, H)    = mean_e Ws_e
        # bl_mean: (1, H)    = mean_e bl_e
        H = ws_mean.shape[-1]
        # All-etype neighbor messages in one wide MXU matmul: (N, E*H)
        msg = jnp.dot(h, wc_cat, preferred_element_type=jnp.float32) + bc_cat
        # Etype-invariant self path (mean over etypes already folded in).
        out = jnp.dot(h, ws_mean, preferred_element_type=jnp.float32) + bl_mean
        # Dense scatter-mean per etype (static unroll; E is small, all in VMEM)
        for e in range(num_etypes):
            out = out + jnp.dot(A[e], msg[:, e * H:(e + 1) * H],
                                preferred_element_type=jnp.float32)
        return out

    # convs[0]: input_features -> hidden
    h = hetero_sage(x, wc0_ref[...], bc0_ref[...], ws0_ref[...], bl0_ref[...])

    # F.normalize(p=2, dim=-1) -> relu ; dropout is identity in eval mode.
    ssq = jnp.sum(h * h, axis=-1, keepdims=True)
    h = h * jax.lax.rsqrt(jnp.maximum(ssq, 1e-24))   # == h / max(||h||, 1e-12)
    h = jnp.maximum(h, 0.0)
    # TODO(synk): F.dropout(p=0.5) skipped — identity in eval mode.

    # convs[-1]: hidden -> hidden
    h = hetero_sage(h, wc1_ref[...], bc1_ref[...], ws1_ref[...], bl1_ref[...])

    o_ref[...] = h


# ------------------------------ wrapper --------------------------------------

def metrical_gnn_pallas(x, A, packed0, packed1):
    """Single fused pallas_call; all operands resident in VMEM."""
    N = x.shape[0]
    num_etypes = A.shape[0]
    H = packed0[2].shape[-1]                         # ws_mean: (F_in, H)

    args = (x, A) + tuple(packed0) + tuple(packed1)
    vmem_spec = pl.BlockSpec(memory_space=pltpu.MemorySpace.VMEM)

    return pl.pallas_call(
        functools.partial(_fused_metrical_gnn_kernel, num_etypes=num_etypes),
        out_shape=jax.ShapeDtypeStruct((N, H), jnp.float32),
        in_specs=[vmem_spec] * len(args),
        out_specs=vmem_spec,
    )(*args)


# ------------------------------ glue (plain JAX) -----------------------------

def build_adjacency(edge_index, edge_type, num_nodes, num_etypes):
    """Per-etype row-normalized adjacency A[e, dst, src] (dense scatter-mean)."""
    src, dst = edge_index[0], edge_index[1]
    A = jnp.zeros((num_etypes, num_nodes, num_nodes), jnp.float32)
    A = A.at[edge_type, dst, src].add(1.0)           # one scatter for all etypes
    deg = jnp.sum(A, axis=-1, keepdims=True)
    return A / jnp.maximum(deg, 1.0)                 # isolated dst -> agg = 0


def pack_hetero_layer_params(Wn, bn, Ws, Wnb, bl):
    """Pre-fold neigh_linear, cat-Linear and the HeteroConv 'mean' reduction.

    Wn:  (E, f, f)   neigh_linear weights
    bn:  (E, 1, f)   neigh_linear bias
    Ws:  (E, f, H)   self part of cat-Linear
    Wnb: (E, f, H)   neigh part of cat-Linear
    bl:  (E, 1, H)   cat-Linear bias

    Returns
      wc_cat : (f, E*H)  columns grouped by etype, = (Wn_e @ Wnb_e)/E
      bc_cat : (1, E*H)                            = (bn_e @ Wnb_e)/E
      ws_mean: (f, H)    = mean_e Ws_e
      bl_mean: (1, H)    = mean_e bl_e
    """
    E, f, _ = Wn.shape
    H = Ws.shape[-1]
    Wc = jnp.einsum('eij,ejh->eih', Wn, Wnb) / E     # (E, f, H)
    bc = jnp.einsum('eij,ejh->eih', bn, Wnb) / E     # (E, 1, H)
    wc_cat = jnp.transpose(Wc, (1, 0, 2)).reshape(f, E * H)
    bc_cat = bc.reshape(1, E * H)
    ws_mean = jnp.mean(Ws, axis=0)
    bl_mean = jnp.mean(bl, axis=0)
    return (wc_cat, bc_cat, ws_mean, bl_mean)


def init_hetero_layer_params(key, num_etypes, f_in, f_out, scale=0.1):
    ks = jax.random.split(key, 5)
    Wn = scale * jax.random.normal(ks[0], (num_etypes, f_in, f_in), jnp.float32)
    bn = scale * jax.random.normal(ks[1], (num_etypes, 1, f_in), jnp.float32)
    Ws = scale * jax.random.normal(ks[2], (num_etypes, f_in, f_out), jnp.float32)
    Wnb = scale * jax.random.normal(ks[3], (num_etypes, f_in, f_out), jnp.float32)
    bl = scale * jax.random.normal(ks[4], (num_etypes, 1, f_out), jnp.float32)
    return (Wn, bn, Ws, Wnb, bl)


@functools.partial(jax.jit, static_argnums=(4,))
def metrical_gnn_forward(params, x, edge_index, edge_type, num_etypes):
    """MetricalGNN.forward with default flags (metrical/jk/reledge disabled)."""
    A = build_adjacency(edge_index, edge_type, x.shape[0], num_etypes)
    layer0, layer1 = params
    packed0 = pack_hetero_layer_params(*layer0)      # convs[0]: input -> hidden
    packed1 = pack_hetero_layer_params(*layer1)      # convs[-1]: hidden -> hidden
    return metrical_gnn_pallas(x, A, packed0, packed1)


# --------------------------------- main --------------------------------------

if __name__ == "__main__":
    key = jax.random.PRNGKey(0)
    N = 24                 # nodes
    F_IN = 16              # input_features
    H = 32                 # hidden_features
    NUM_ETYPES = 3         # len(etypes)
    E = 64                 # edges

    k_x, k_ei, k_et, k_p0, k_p1 = jax.random.split(key, 5)
    x = jax.random.normal(k_x, (N, F_IN), jnp.float32)
    edge_index = jax.random.randint(k_ei, (2, E), 0, N, dtype=jnp.int32)
    edge_type = jax.random.randint(k_et, (E,), 0, NUM_ETYPES, dtype=jnp.int32)

    params = (
        init_hetero_layer_params(k_p0, NUM_ETYPES, F_IN, H),  # convs[0]
        init_hetero_layer_params(k_p1, NUM_ETYPES, H, H),     # convs[-1]
    )

    out = metrical_gnn_forward(params, x, edge_index, edge_type, NUM_ETYPES)
    out = jax.block_until_ready(out)
    assert out.shape == (N, H) and out.dtype == jnp.float32
    assert bool(jnp.all(jnp.isfinite(out)))
    print("KERNEL_OK")
</pallas_src>

<mosaic_0001>
module attributes {stable_mosaic.version = 11 : i64} {
  func.func private @main(%arg0: i32) attributes {dimension_semantics = [#tpu.dimension_semantics<core_parallel>], iteration_bounds = array<i64: 2>, tpu.core_type = #tpu.core_type<sc_scalar_subcore>, window_params = []} {
    return
  }
}

module attributes {stable_mosaic.version = 11 : i64} {
  func.func private @main(%arg0: i32) attributes {dimension_semantics = [#tpu.dimension_semantics<core_parallel>], iteration_bounds = array<i64: 2>, tpu.core_type = #tpu.core_type<sc_scalar_subcore>, window_params = []} {
    return
  }
}

module attributes {stable_mosaic.version = 11 : i64} {
  func.func @_fused_metrical_gnn_kernel(%arg0: memref<24x16xf32, #tpu.memory_space<vmem>>, %arg1: memref<3x24x24xf32, #tpu.memory_space<vmem>>, %arg2: memref<16x96xf32, #tpu.memory_space<vmem>>, %arg3: memref<1x96xf32, #tpu.memory_space<vmem>>, %arg4: memref<16x32xf32, #tpu.memory_space<vmem>>, %arg5: memref<1x32xf32, #tpu.memory_space<vmem>>, %arg6: memref<32x96xf32, #tpu.memory_space<vmem>>, %arg7: memref<1x96xf32, #tpu.memory_space<vmem>>, %arg8: memref<32x32xf32, #tpu.memory_space<vmem>>, %arg9: memref<1x32xf32, #tpu.memory_space<vmem>>, %arg10: memref<24x32xf32, #tpu.memory_space<vmem>>) attributes {dimension_semantics = [], scalar_prefetch = 0 : i64, scratch_operands = 0 : i64, tpu.core_type = #tpu.core_type<tc>} {
    %c0 = arith.constant 0 : index
    %c0_0 = arith.constant 0 : index
    %0 = vector.load %arg0[%c0, %c0_0] : memref<24x16xf32, #tpu.memory_space<vmem>>, vector<24x16xf32>
    %c0_1 = arith.constant 0 : index
    %c0_2 = arith.constant 0 : index
    %c0_3 = arith.constant 0 : index
    %1 = vector.load %arg1[%c0_1, %c0_2, %c0_3] : memref<3x24x24xf32, #tpu.memory_space<vmem>>, vector<3x24x24xf32>
    %c0_4 = arith.constant 0 : index
    %c0_5 = arith.constant 0 : index
    %2 = vector.load %arg2[%c0_4, %c0_5] : memref<16x96xf32, #tpu.memory_space<vmem>>, vector<16x96xf32>
    %c0_6 = arith.constant 0 : index
    %c0_7 = arith.constant 0 : index
    %3 = vector.load %arg3[%c0_6, %c0_7] : memref<1x96xf32, #tpu.memory_space<vmem>>, vector<1x96xf32>
    %c0_8 = arith.constant 0 : index
    %c0_9 = arith.constant 0 : index
    %4 = vector.load %arg4[%c0_8, %c0_9] : memref<16x32xf32, #tpu.memory_space<vmem>>, vector<16x32xf32>
    %c0_10 = arith.constant 0 : index
    %c0_11 = arith.constant 0 : index
    %5 = vector.load %arg5[%c0_10, %c0_11] : memref<1x32xf32, #tpu.memory_space<vmem>>, vector<1x32xf32>
    %cst = arith.constant dense<0.000000e+00> : vector<24x96xf32>
    %6 = tpu.matmul %0, %2, %cst {dimension_numbers = #tpu.dot_dimension_numbers<[1], [0], [0], [1], [0, 0, 1, 1], [], []>} : vector<24x16xf32>, vector<16x96xf32>, vector<24x96xf32> -> vector<24x96xf32>
    %7 = vector.broadcast %3 : vector<1x96xf32> to vector<24x96xf32>
    %8 = arith.addf %6, %7 : vector<24x96xf32>
    %cst_12 = arith.constant dense<0.000000e+00> : vector<24x32xf32>
    %9 = tpu.matmul %0, %4, %cst_12 {dimension_numbers = #tpu.dot_dimension_numbers<[1], [0], [0], [1], [0, 0, 1, 1], [], []>} : vector<24x16xf32>, vector<16x32xf32>, vector<24x32xf32> -> vector<24x32xf32>
    %10 = vector.broadcast %5 : vector<1x32xf32> to vector<24x32xf32>
    %11 = arith.addf %9, %10 : vector<24x32xf32>
    %12 = vector.extract_strided_slice %1 {offsets = [0, 0, 0], sizes = [1, 24, 24], strides = [1, 1, 1]} : vector<3x24x24xf32> to vector<1x24x24xf32>
    %13 = vector.shape_cast %12 : vector<1x24x24xf32> to vector<24x24xf32>
    %14 = vector.extract_strided_slice %8 {offsets = [0, 0], sizes = [24, 32], strides = [1, 1]} : vector<24x96xf32> to vector<24x32xf32>
    %cst_13 = arith.constant dense<0.000000e+00> : vector<24x32xf32>
    %15 = tpu.matmul %13, %14, %cst_13 {dimension_numbers = #tpu.dot_dimension_numbers<[1], [0], [0], [1], [0, 0, 1, 1], [], []>} : vector<24x24xf32>, vector<24x32xf32>, vector<24x32xf32> -> vector<24x32xf32>
    %16 = arith.addf %11, %15 : vector<24x32xf32>
    %17 = vector.extract_strided_slice %1 {offsets = [1, 0, 0], sizes = [1, 24, 24], strides = [1, 1, 1]} : vector<3x24x24xf32> to vector<1x24x24xf32>
    %18 = vector.shape_cast %17 : vector<1x24x24xf32> to vector<24x24xf32>
    %19 = vector.extract_strided_slice %8 {offsets = [0, 32], sizes = [24, 32], strides = [1, 1]} : vector<24x96xf32> to vector<24x32xf32>
    %cst_14 = arith.constant dense<0.000000e+00> : vector<24x32xf32>
    %20 = tpu.matmul %18, %19, %cst_14 {dimension_numbers = #tpu.dot_dimension_numbers<[1], [0], [0], [1], [0, 0, 1, 1], [], []>} : vector<24x24xf32>, vector<24x32xf32>, vector<24x32xf32> -> vector<24x32xf32>
    %21 = arith.addf %16, %20 : vector<24x32xf32>
    %22 = vector.extract_strided_slice %1 {offsets = [2, 0, 0], sizes = [1, 24, 24], strides = [1, 1, 1]} : vector<3x24x24xf32> to vector<1x24x24xf32>
    %23 = vector.shape_cast %22 : vector<1x24x24xf32> to vector<24x24xf32>
    %24 = vector.extract_strided_slice %8 {offsets = [0, 64], sizes = [24, 32], strides = [1, 1]} : vector<24x96xf32> to vector<24x32xf32>
    %cst_15 = arith.constant dense<0.000000e+00> : vector<24x32xf32>
    %25 = tpu.matmul %23, %24, %cst_15 {dimension_numbers = #tpu.dot_dimension_numbers<[1], [0], [0], [1], [0, 0, 1, 1], [], []>} : vector<24x24xf32>, vector<24x32xf32>, vector<24x32xf32> -> vector<24x32xf32>
    %26 = arith.addf %21, %25 : vector<24x32xf32>
    %27 = arith.mulf %26, %26 : vector<24x32xf32>
    %cst_16 = arith.constant dense<0.000000e+00> : vector<24xf32>
    %28 = vector.multi_reduction <add>, %27, %cst_16 [1] : vector<24x32xf32> to vector<24xf32>
    %29 = vector.shape_cast %28 : vector<24xf32> to vector<24x1xf32>
    %cst_17 = arith.constant 1.000000e-24 : f32
    %30 = vector.broadcast %cst_17 : f32 to vector<24x1xf32>
    %31 = arith.maximumf %29, %30 : vector<24x1xf32>
    %32 = math.rsqrt %31 : vector<24x1xf32>
    %33 = vector.broadcast %32 : vector<24x1xf32> to vector<24x32xf32>
    %34 = arith.mulf %26, %33 : vector<24x32xf32>
    %cst_18 = arith.constant 0.000000e+00 : f32
    %35 = vector.broadcast %cst_18 : f32 to vector<24x32xf32>
    %36 = arith.maximumf %34, %35 : vector<24x32xf32>
    %c0_19 = arith.constant 0 : index
    %c0_20 = arith.constant 0 : index
    %37 = vector.load %arg6[%c0_19, %c0_20] : memref<32x96xf32, #tpu.memory_space<vmem>>, vector<32x96xf32>
    %c0_21 = arith.constant 0 : index
    %c0_22 = arith.constant 0 : index
    %38 = vector.load %arg7[%c0_21, %c0_22] : memref<1x96xf32, #tpu.memory_space<vmem>>, vector<1x96xf32>
    %c0_23 = arith.constant 0 : index
    %c0_24 = arith.constant 0 : index
    %39 = vector.load %arg8[%c0_23, %c0_24] : memref<32x32xf32, #tpu.memory_space<vmem>>, vector<32x32xf32>
    %c0_25 = arith.constant 0 : index
    %c0_26 = arith.constant 0 : index
    %40 = vector.load %arg9[%c0_25, %c0_26] : memref<1x32xf32, #tpu.memory_space<vmem>>, vector<1x32xf32>
    %cst_27 = arith.constant dense<0.000000e+00> : vector<24x96xf32>
    %41 = tpu.matmul %36, %37, %cst_27 {dimension_numbers = #tpu.dot_dimension_numbers<[1], [0], [0], [1], [0, 0, 1, 1], [], []>} : vector<24x32xf32>, vector<32x96xf32>, vector<24x96xf32> -> vector<24x96xf32>
    %42 = vector.broadcast %38 : vector<1x96xf32> to vector<24x96xf32>
    %43 = arith.addf %41, %42 : vector<24x96xf32>
    %cst_28 = arith.constant dense<0.000000e+00> : vector<24x32xf32>
    %44 = tpu.matmul %36, %39, %cst_28 {dimension_numbers = #tpu.dot_dimension_numbers<[1], [0], [0], [1], [0, 0, 1, 1], [], []>} : vector<24x32xf32>, vector<32x32xf32>, vector<24x32xf32> -> vector<24x32xf32>
    %45 = vector.broadcast %40 : vector<1x32xf32> to vector<24x32xf32>
    %46 = arith.addf %44, %45 : vector<24x32xf32>
    %47 = vector.extract_strided_slice %1 {offsets = [0, 0, 0], sizes = [1, 24, 24], strides = [1, 1, 1]} : vector<3x24x24xf32> to vector<1x24x24xf32>
    %48 = vector.shape_cast %47 : vector<1x24x24xf32> to vector<24x24xf32>
    %49 = vector.extract_strided_slice %43 {offsets = [0, 0], sizes = [24, 32], strides = [1, 1]} : vector<24x96xf32> to vector<24x32xf32>
    %cst_29 = arith.constant dense<0.000000e+00> : vector<24x32xf32>
    %50 = tpu.matmul %48, %49, %cst_29 {dimension_numbers = #tpu.dot_dimension_numbers<[1], [0], [0], [1], [0, 0, 1, 1], [], []>} : vector<24x24xf32>, vector<24x32xf32>, vector<24x32xf32> -> vector<24x32xf32>
    %51 = arith.addf %46, %50 : vector<24x32xf32>
    %52 = vector.extract_strided_slice %1 {offsets = [1, 0, 0], sizes = [1, 24, 24], strides = [1, 1, 1]} : vector<3x24x24xf32> to vector<1x24x24xf32>
    %53 = vector.shape_cast %52 : vector<1x24x24xf32> to vector<24x24xf32>
    %54 = vector.extract_strided_slice %43 {offsets = [0, 32], sizes = [24, 32], strides = [1, 1]} : vector<24x96xf32> to vector<24x32xf32>
    %cst_30 = arith.constant dense<0.000000e+00> : vector<24x32xf32>
    %55 = tpu.matmul %53, %54, %cst_30 {dimension_numbers = #tpu.dot_dimension_numbers<[1], [0], [0], [1], [0, 0, 1, 1], [], []>} : vector<24x24xf32>, vector<24x32xf32>, vector<24x32xf32> -> vector<24x32xf32>
    %56 = arith.addf %51, %55 : vector<24x32xf32>
    %57 = vector.extract_strided_slice %1 {offsets = [2, 0, 0], sizes = [1, 24, 24], strides = [1, 1, 1]} : vector<3x24x24xf32> to vector<1x24x24xf32>
    %58 = vector.shape_cast %57 : vector<1x24x24xf32> to vector<24x24xf32>
    %59 = vector.extract_strided_slice %43 {offsets = [0, 64], sizes = [24, 32], strides = [1, 1]} : vector<24x96xf32> to vector<24x32xf32>
    %cst_31 = arith.constant dense<0.000000e+00> : vector<24x32xf32>
    %60 = tpu.matmul %58, %59, %cst_31 {dimension_numbers = #tpu.dot_dimension_numbers<[1], [0], [0], [1], [0, 0, 1, 1], [], []>} : vector<24x24xf32>, vector<24x32xf32>, vector<24x32xf32> -> vector<24x32xf32>
    %61 = arith.addf %56, %60 : vector<24x32xf32>
    %c0_32 = arith.constant 0 : index
    %c0_33 = arith.constant 0 : index
    %62 = vector.load %arg10[%c0_32, %c0_33] : memref<24x32xf32, #tpu.memory_space<vmem>>, vector<24x32xf32>
    tpu.vector_store %arg10[%c0_32, %c0_33], %61 {strides = array<i32>} : memref<24x32xf32, #tpu.memory_space<vmem>>, vector<24x32xf32>,
    return
  }
}

</mosaic_0001>

<llo_original>
// kernel: metrical_gnn_forward.1
$region0: #{metrical_gnn_forward.1}
  #allocation0 [shape = 'u32[]', space=smem, size = 0x4, offset = 0x4, fixed_abs, tag = 'smem constant byte address 0x4 - core index']
  #allocation1 [shape = 'u32[144,128]{1,0:T(1,128)}', space=vmem, size = 0x12000, scoped, tag = 'internal scratch']
  %s0 = inlined_call_operand.vmem [shape: f32[24,16], index: 0, kind: input, shape index: {}]
  %s1 = inlined_call_operand.vmem [shape: f32[3,24,24], index: 1, kind: input, shape index: {}]
  %s2 = inlined_call_operand.vmem [shape: f32[16,96], index: 2, kind: input, shape index: {}]
  %s3 = inlined_call_operand.vmem [shape: f32[1,96], index: 3, kind: input, shape index: {}]
  %s4 = inlined_call_operand.vmem [shape: f32[16,32], index: 4, kind: input, shape index: {}]
  %s5 = inlined_call_operand.vmem [shape: f32[1,32], index: 5, kind: input, shape index: {}]
  %s6 = inlined_call_operand.vmem [shape: f32[32,96], index: 6, kind: input, shape index: {}]
  %s7 = inlined_call_operand.vmem [shape: f32[1,96], index: 7, kind: input, shape index: {}]
  %s8 = inlined_call_operand.vmem [shape: f32[32,32], index: 8, kind: input, shape index: {}]
  %s9 = inlined_call_operand.vmem [shape: f32[1,32], index: 9, kind: input, shape index: {}]
  %s10 = inlined_call_operand.hbm [shape: f32[24,32], index: 10, kind: output, shape index: {}]
  %s11 = sld [smem:[#allocation0]]
  $region50: #{metrical_gnn_forward.1} parent=0
    _
  %s13 = ssub.s32 1, %s11
  %s14 = scalar_select 0, %s13, %s11
  $region1: #{metrical_gnn_forward.1} parent=0
    #allocation2 [shape = 'u8[12288]{0}', space=vmem, size = 0x3000, scoped, tag = 'output window, operand 0, single buffered']
    #allocation3 [shape = 's32[1]{0}', space=sflag, size = 0x4, scoped, tag = 'scoped memory for metrical_gnn_forward.1']
    %15 = vsyncpa [#allocation3], 0
    // Predicated region
    $region2: #{metrical_gnn_forward.1} parent=1 // pred_check
      _
    $region3: #{metrical_gnn_forward.1} parent=1 // pred_check_branch
      %17 = sbr.rel (0) target = $region5
    $region4: #{metrical_gnn_forward.1} parent=1 // pred_region
      _
    $region5: #{metrical_gnn_forward.1} parent=1 // pred_fallthru
      _
    // Predicated region
    $region6: #{metrical_gnn_forward.1} parent=1 // pred_check
      _
    $region7: #{metrical_gnn_forward.1} parent=1 // pred_check_branch
      %19 = sbr.rel (0) target = $region9
    $region8: #{metrical_gnn_forward.1} parent=1 // pred_region
      _
    $region9: #{metrical_gnn_forward.1} parent=1 // pred_fallthru
      _
    // Predicated region
    $region10: #{metrical_gnn_forward.1} parent=1 // pred_check
      _
    $region11: #{metrical_gnn_forward.1} parent=1 // pred_check_branch
      %21 = sbr.rel (0) target = $region13
    $region12: #{metrical_gnn_forward.1} parent=1 // pred_region
      _
    $region13: #{metrical_gnn_forward.1} parent=1 // pred_fallthru
      _
    // Predicated region
    $region14: #{metrical_gnn_forward.1} parent=1 // pred_check
      _
    $region15: #{metrical_gnn_forward.1} parent=1 // pred_check_branch
      %23 = sbr.rel (0) target = $region17
    $region16: #{metrical_gnn_forward.1} parent=1 // pred_region
      _
    $region17: #{metrical_gnn_forward.1} parent=1 // pred_fallthru
      _
    // Predicated region
    $region18: #{metrical_gnn_forward.1} parent=1 // pred_check
      _
    $region19: #{metrical_gnn_forward.1} parent=1 // pred_check_branch
      %25 = sbr.rel (0) target = $region21
    $region20: #{metrical_gnn_forward.1} parent=1 // pred_region
      _
    $region21: #{metrical_gnn_forward.1} parent=1 // pred_fallthru
      _
    // Predicated region
    $region22: #{metrical_gnn_forward.1} parent=1 // pred_check
      _
    $region23: #{metrical_gnn_forward.1} parent=1 // pred_check_branch
      %27 = sbr.rel (0) target = $region25
    $region24: #{metrical_gnn_forward.1} parent=1 // pred_region
      _
    $region25: #{metrical_gnn_forward.1} parent=1 // pred_fallthru
      _
    // Predicated region
    $region26: #{metrical_gnn_forward.1} parent=1 // pred_check
      _
    $region27: #{metrical_gnn_forward.1} parent=1 // pred_check_branch
      %29 = sbr.rel (0) target = $region29
    $region28: #{metrical_gnn_forward.1} parent=1 // pred_region
      _
    $region29: #{metrical_gnn_forward.1} parent=1 // pred_fallthru
      _
    // Predicated region
    $region30: #{metrical_gnn_forward.1} parent=1 // pred_check
      _
    $region31: #{metrical_gnn_forward.1} parent=1 // pred_check_branch
      %31 = sbr.rel (0) target = $region33
    $region32: #{metrical_gnn_forward.1} parent=1 // pred_region
      _
    $region33: #{metrical_gnn_forward.1} parent=1 // pred_fallthru
      _
    // Predicated region
    $region34: #{metrical_gnn_forward.1} parent=1 // pred_check
      _
    $region35: #{metrical_gnn_forward.1} parent=1 // pred_check_branch
      %33 = sbr.rel (0) target = $region37
    $region36: #{metrical_gnn_forward.1} parent=1 // pred_region
      _
    $region37: #{metrical_gnn_forward.1} parent=1 // pred_fallthru
      _
    // Predicated region
    $region38: #{metrical_gnn_forward.1} parent=1 // pred_check
      _
    $region39: #{metrical_gnn_forward.1} parent=1 // pred_check_branch
      %35 = sbr.rel (0) target = $region41
    $region40: #{metrical_gnn_forward.1} parent=1 // pred_region
      _
    $region41: #{metrical_gnn_forward.1} parent=1 // pred_fallthru
      _
    %v36 = vld [vmem:[%s0] sm:$0xff]
    %v37 = vld [vmem:[%s0 + $0x8] sm:$0xff]
    %v38 = vld [vmem:[%s0 + $0x10] sm:$0xff]
    %v39 = vld [vmem:[%s1] sm:$0xff]
    %v40 = vld [vmem:[%s1 + $0x8] sm:$0xff]
    %v41 = vld [vmem:[%s1 + $0x10] sm:$0xff]
    %v42 = vld [vmem:[%s1 + $0x18] sm:$0xff]
    %v43 = vld [vmem:[%s1 + $0x20] sm:$0xff]
    %v44 = vld [vmem:[%s1 + $0x28] sm:$0xff]
    %v45 = vld [vmem:[%s1 + $0x30] sm:$0xff]
    %v46 = vld [vmem:[%s1 + $0x38] sm:$0xff]
    %v47 = vld [vmem:[%s1 + $0x40] sm:$0xff]
    %v48 = vld [vmem:[%s2] sm:$0xff]
    %v49 = vld [vmem:[%s2 + $0x8] sm:$0xff]
    %v50 = vld [vmem:[%s3] sm:$0x1]
    %v51 = vld [vmem:[%s4] sm:$0xff]
    %v52 = vld [vmem:[%s4 + $0x8] sm:$0xff]
    %v53 = vld [vmem:[%s5] sm:$0x1]
    %v55 = vlaneseq
    %v56 = vshrl.u32 %v55, 7
    %v57 = vsub.s32 0, %v56
    %v58 = vrot.slane %v50, %v57
    %vm60 = vcmask 130048
    %v62 = vsel %vm60, %v36, 0
    %v65 = vsel %vm60, %v37, 0
    %v68 = vsel %vm60, %v38, 0
    %70 = vmatprep.subr.mxu0 0.0
    %71 = vmatpush1.msra.mxu0 0.0
    %72 = vmatprep.subr.mxu0 0.0
    %73 = vmatpush1.msra.mxu0 0.0
    %74 = vmatprep.subr.mxu0 0.0
    %75 = vmatpush1.msra.mxu0 0.0
    %76 = vmatprep.subr.mxu0 0.0
    %77 = vmatpush1.msra.mxu0 0.0
    %78 = vmatprep.subr.mxu0 0.0
    %79 = vmatpush1.msra.mxu0 0.0
    %80 = vmatprep.subr.mxu0 0.0
    %81 = vmatpush1.msra.mxu0 0.0
    %82 = vmatprep.subr.mxu0 0.0
    %83 = vmatpush1.msra.mxu0 0.0
    %84 = vmatprep.subr.mxu0 0.0
    %85 = vmatpush1.msra.mxu0 0.0
    %86 = vmatprep.subr.mxu0 0.0
    %87 = vmatpush1.msra.mxu0 0.0
    %88 = vmatprep.subr.mxu0 0.0
    %89 = vmatpush1.msra.mxu0 0.0
    %90 = vmatprep.subr.mxu0 0.0
    %91 = vmatpush1.msra.mxu0 0.0
    %92 = vmatprep.subr.mxu0 0.0
    %93 = vmatpush1.msra.mxu0 0.0
    %94 = vmatprep.subr.mxu0 0.0
    %95 = vmatpush1.msra.mxu0 0.0
    %96 = vmatprep.subr.mxu0 0.0
    %97 = vmatpush1.msra.mxu0 0.0
    %98 = vmatprep.subr.mxu0 0.0
    %99 = vmatpush1.msra.mxu0 %v49
    %100 = vmatprep.subr.mxu0 0.0
    %101 = vmatpush1.msra.mxu0 %v48
    %102 = vmatprep.subr.mxu0 0.0
    %103 = vmatpush2.msra.mxu0 0.0
    %104 = vmatprep.subr.mxu0 0.0
    %105 = vmatpush2.msra.mxu0 0.0
    %106 = vmatprep.subr.mxu0 0.0
    %107 = vmatpush2.msra.mxu0 0.0
    %108 = vmatprep.subr.mxu0 0.0
    %109 = vmatpush2.msra.mxu0 0.0
    %110 = vmatprep.subr.mxu0 0.0
    %111 = vmatpush2.msra.mxu0 0.0
    %112 = vmatprep.subr.mxu0 0.0
    %113 = vmatpush2.msra.mxu0 0.0
    %114 = vmatprep.subr.mxu0 0.0
    %115 = vmatpush2.msra.mxu0 0.0
    %116 = vmatprep.subr.mxu0 0.0
    %117 = vmatpush2.msra.mxu0 0.0
    %118 = vmatprep.subr.mxu0 0.0
    %119 = vmatpush2.msra.mxu0 0.0
    %120 = vmatprep.subr.mxu0 0.0
    %121 = vmatpush2.msra.mxu0 0.0
    %122 = vmatprep.subr.mxu0 0.0
    %123 = vmatpush2.msra.mxu0 0.0
    %124 = vmatprep.subr.mxu0 0.0
    %125 = vmatpush2.msra.mxu0 0.0
    %126 = vmatprep.subr.mxu0 0.0
    %127 = vmatpush2.msra.mxu0 0.0
    %128 = vmatprep.subr.mxu0 0.0
    %129 = vmatpush2.msra.mxu0 0.0
    %130 = vmatprep.subr.mxu0 0.0
    %131 = vmatpush2.msra.mxu0 0.0
    %132 = vmatprep.subr.mxu0 0.0
    %133 = vmatpush2.msra.mxu0 0.0
    %134 = vmatprep.mubr.f32.mxu0 0.0
    %135 = vmatmul.mubr.f32.gmra.mxu0 %v62
    %v136 = vpop.f32.mrf.mxu0
    %v137 = vadd.f32 %v58, %v136
    %v138 = vpop.f32.mrf.mxu0
    %139 = vmatprep.mubr.f32.mxu0 0.0
    %140 = vmatmul.mubr.f32.gmra.mxu0 %v65
    %v141 = vpop.f32.mrf.mxu0
    %v142 = vadd.f32 %v58, %v141
    %v143 = vpop.f32.mrf.mxu0
    %144 = vmatprep.mubr.f32.mxu0 0.0
    %145 = vmatmul.mubr.f32.gmra.mxu0 %v68
    %v146 = vpop.f32.mrf.mxu0
    %v147 = vadd.f32 %v58, %v146
    %v148 = vpop.f32.mrf.mxu0
    %149 = vdwg.mxu0
    %v151 = vlaneseq
    %v152 = vshrl.u32 %v151, 7
    %v153 = vsub.s32 0, %v152
    %v154 = vrot.slane %v53, %v153
    %156 = vmatprep.subr.mxu0 0.0
    %157 = vmatpush1.msra.mxu0 0.0
    %158 = vmatprep.subr.mxu0 0.0
    %159 = vmatpush1.msra.mxu0 0.0
    %160 = vmatprep.subr.mxu0 0.0
    %161 = vmatpush1.msra.mxu0 0.0
    %162 = vmatprep.subr.mxu0 0.0
    %163 = vmatpush1.msra.mxu0 0.0
    %164 = vmatprep.subr.mxu0 0.0
    %165 = vmatpush1.msra.mxu0 0.0
    %166 = vmatprep.subr.mxu0 0.0
    %167 = vmatpush1.msra.mxu0 0.0
    %168 = vmatprep.subr.mxu0 0.0
    %169 = vmatpush1.msra.mxu0 0.0
    %170 = vmatprep.subr.mxu0 0.0
    %171 = vmatpush1.msra.mxu0 0.0
    %172 = vmatprep.subr.mxu0 0.0
    %173 = vmatpush1.msra.mxu0 0.0
    %174 = vmatprep.subr.mxu0 0.0
    %175 = vmatpush1.msra.mxu0 0.0
    %176 = vmatprep.subr.mxu0 0.0
    %177 = vmatpush1.msra.mxu0 0.0
    %178 = vmatprep.subr.mxu0 0.0
    %179 = vmatpush1.msra.mxu0 0.0
    %180 = vmatprep.subr.mxu0 0.0
    %181 = vmatpush1.msra.mxu0 0.0
    %182 = vmatprep.subr.mxu0 0.0
    %183 = vmatpush1.msra.mxu0 0.0
    %184 = vmatprep.subr.mxu0 0.0
    %185 = vmatpush1.msra.mxu0 %v52
    %186 = vmatprep.subr.mxu0 0.0
    %187 = vmatpush1.msra.mxu0 %v51
    %188 = vmatprep.subr.mxu0 0.0
    %189 = vmatpush2.msra.mxu0 0.0
    %190 = vmatprep.subr.mxu0 0.0
    %191 = vmatpush2.msra.mxu0 0.0
    %192 = vmatprep.subr.mxu0 0.0
    %193 = vmatpush2.msra.mxu0 0.0
    %194 = vmatprep.subr.mxu0 0.0
    %195 = vmatpush2.msra.mxu0 0.0
    %196 = vmatprep.subr.mxu0 0.0
    %197 = vmatpush2.msra.mxu0 0.0
    %198 = vmatprep.subr.mxu0 0.0
    %199 = vmatpush2.msra.mxu0 0.0
    %200 = vmatprep.subr.mxu0 0.0
    %201 = vmatpush2.msra.mxu0 0.0
    %202 = vmatprep.subr.mxu0 0.0
    %203 = vmatpush2.msra.mxu0 0.0
    %204 = vmatprep.subr.mxu0 0.0
    %205 = vmatpush2.msra.mxu0 0.0
    %206 = vmatprep.subr.mxu0 0.0
    %207 = vmatpush2.msra.mxu0 0.0
    %208 = vmatprep.subr.mxu0 0.0
    %209 = vmatpush2.msra.mxu0 0.0
    %210 = vmatprep.subr.mxu0 0.0
    %211 = vmatpush2.msra.mxu0 0.0
    %212 = vmatprep.subr.mxu0 0.0
    %213 = vmatpush2.msra.mxu0 0.0
    %214 = vmatprep.subr.mxu0 0.0
    %215 = vmatpush2.msra.mxu0 0.0
    %216 = vmatprep.subr.mxu0 0.0
    %217 = vmatpush2.msra.mxu0 0.0
    %218 = vmatprep.subr.mxu0 0.0
    %219 = vmatpush2.msra.mxu0 0.0
    %220 = vmatprep.mubr.f32.mxu0 0.0
    %221 = vmatmul.mubr.f32.gmra.mxu0 %v62
    %v222 = vpop.f32.mrf.mxu0
    %v223 = vadd.f32 %v154, %v222
    %v224 = vpop.f32.mrf.mxu0
    %225 = vmatprep.mubr.f32.mxu0 0.0
    %226 = vmatmul.mubr.f32.gmra.mxu0 %v65
    %v227 = vpop.f32.mrf.mxu0
    %v228 = vadd.f32 %v154, %v227
    %v229 = vpop.f32.mrf.mxu0
    %230 = vmatprep.mubr.f32.mxu0 0.0
    %231 = vmatmul.mubr.f32.gmra.mxu0 %v68
    %v232 = vpop.f32.mrf.mxu0
    %v233 = vadd.f32 %v154, %v232
    %v234 = vpop.f32.mrf.mxu0
    %235 = vdwg.mxu0
    %vm236 = vcmask 195584
    %v238 = vsel %vm236, %v39, 0
    %v241 = vsel %vm236, %v40, 0
    %v244 = vsel %vm236, %v41, 0
    %246 = vmatprep.subr.mxu0 0.0
    %247 = vmatpush1.msra.mxu0 0.0
    %248 = vmatprep.subr.mxu0 0.0
    %249 = vmatpush1.msra.mxu0 0.0
    %250 = vmatprep.subr.mxu0 0.0
    %251 = vmatpush1.msra.mxu0 0.0
    %252 = vmatprep.subr.mxu0 0.0
    %253 = vmatpush1.msra.mxu0 0.0
    %254 = vmatprep.subr.mxu0 0.0
    %255 = vmatpush1.msra.mxu0 0.0
    %256 = vmatprep.subr.mxu0 0.0
    %257 = vmatpush1.msra.mxu0 0.0
    %258 = vmatprep.subr.mxu0 0.0
    %259 = vmatpush1.msra.mxu0 0.0
    %260 = vmatprep.subr.mxu0 0.0
    %261 = vmatpush1.msra.mxu0 0.0
    %262 = vmatprep.subr.mxu0 0.0
    %263 = vmatpush1.msra.mxu0 0.0
    %264 = vmatprep.subr.mxu0 0.0
    %265 = vmatpush1.msra.mxu0 0.0
    %266 = vmatprep.subr.mxu0 0.0
    %267 = vmatpush1.msra.mxu0 0.0
    %268 = vmatprep.subr.mxu0 0.0
    %269 = vmatpush1.msra.mxu0 0.0
    %270 = vmatprep.subr.mxu0 0.0
    %271 = vmatpush1.msra.mxu0 0.0
    %272 = vmatprep.subr.mxu0 0.0
    %273 = vmatpush1.msra.mxu0 %v147
    %274 = vmatprep.subr.mxu0 0.0
    %275 = vmatpush1.msra.mxu0 %v142
    %276 = vmatprep.subr.mxu0 0.0
    %277 = vmatpush1.msra.mxu0 %v137
    %278 = vmatprep.subr.mxu0 0.0
    %279 = vmatpush2.msra.mxu0 0.0
    %280 = vmatprep.subr.mxu0 0.0
    %281 = vmatpush2.msra.mxu0 0.0
    %282 = vmatprep.subr.mxu0 0.0
    %283 = vmatpush2.msra.mxu0 0.0
    %284 = vmatprep.subr.mxu0 0.0
    %285 = vmatpush2.msra.mxu0 0.0
    %286 = vmatprep.subr.mxu0 0.0
    %287 = vmatpush2.msra.mxu0 0.0
    %288 = vmatprep.subr.mxu0 0.0
    %289 = vmatpush2.msra.mxu0 0.0
    %290 = vmatprep.subr.mxu0 0.0
    %291 = vmatpush2.msra.mxu0 0.0
    %292 = vmatprep.subr.mxu0 0.0
    %293 = vmatpush2.msra.mxu0 0.0
    %294 = vmatprep.subr.mxu0 0.0
    %295 = vmatpush2.msra.mxu0 0.0
    %296 = vmatprep.subr.mxu0 0.0
    %297 = vmatpush2.msra.mxu0 0.0
    %298 = vmatprep.subr.mxu0 0.0
    %299 = vmatpush2.msra.mxu0 0.0
    %300 = vmatprep.subr.mxu0 0.0
    %301 = vmatpush2.msra.mxu0 0.0
    %302 = vmatprep.subr.mxu0 0.0
    %303 = vmatpush2.msra.mxu0 0.0
    %304 = vmatprep.subr.mxu0 0.0
    %305 = vmatpush2.msra.mxu0 0.0
    %306 = vmatprep.subr.mxu0 0.0
    %307 = vmatpush2.msra.mxu0 0.0
    %308 = vmatprep.subr.mxu0 0.0
    %309 = vmatpush2.msra.mxu0 0.0
    %310 = vmatprep.mubr.f32.mxu0 0.0
    %311 = vmatmul.mubr.f32.gmra.mxu0 %v238
    %v312 = vpop.f32.mrf.mxu0
    %v313 = vadd.f32 0.0, %v312
    %v314 = vpop.f32.mrf.mxu0
    %315 = vmatprep.mubr.f32.mxu0 0.0
    %316 = vmatmul.mubr.f32.gmra.mxu0 %v241
    %v317 = vpop.f32.mrf.mxu0
    %v318 = vadd.f32 0.0, %v317
    %v319 = vpop.f32.mrf.mxu0
    %320 = vmatprep.mubr.f32.mxu0 0.0
    %321 = vmatmul.mubr.f32.gmra.mxu0 %v244
    %v322 = vpop.f32.mrf.mxu0
    %v323 = vadd.f32 0.0, %v322
    %v324 = vpop.f32.mrf.mxu0
    %325 = vdwg.mxu0
    %v326 = vadd.f32 %v223, %v313
    %v327 = vadd.f32 %v228, %v318
    %v328 = vadd.f32 %v233, %v323
    %332 = vrot.lane.b32.xlu0 %v137, 96
    %v333 = vpop.permute.xlu0 %332
    %334 = vrot.lane.b32.xlu0 %v142, 96
    %v335 = vpop.permute.xlu0 %334
    %336 = vrot.lane.b32.xlu0 %v147, 96
    %v337 = vpop.permute.xlu0 %336
    %v342 = vsel %vm236, %v42, 0
    %v345 = vsel %vm236, %v43, 0
    %v348 = vsel %vm236, %v44, 0
    %350 = vmatprep.subr.mxu0 0.0
    %351 = vmatpush1.msra.mxu0 0.0
    %352 = vmatprep.subr.mxu0 0.0
    %353 = vmatpush1.msra.mxu0 0.0
    %354 = vmatprep.subr.mxu0 0.0
    %355 = vmatpush1.msra.mxu0 0.0
    %356 = vmatprep.subr.mxu0 0.0
    %357 = vmatpush1.msra.mxu0 0.0
    %358 = vmatprep.subr.mxu0 0.0
    %359 = vmatpush1.msra.mxu0 0.0
    %360 = vmatprep.subr.mxu0 0.0
    %361 = vmatpush1.msra.mxu0 0.0
    %362 = vmatprep.subr.mxu0 0.0
    %363 = vmatpush1.msra.mxu0 0.0
    %364 = vmatprep.subr.mxu0 0.0
    %365 = vmatpush1.msra.mxu0 0.0
    %366 = vmatprep.subr.mxu0 0.0
    %367 = vmatpush1.msra.mxu0 0.0
    %368 = vmatprep.subr.mxu0 0.0
    %369 = vmatpush1.msra.mxu0 0.0
    %370 = vmatprep.subr.mxu0 0.0
    %371 = vmatpush1.msra.mxu0 0.0
    %372 = vmatprep.subr.mxu0 0.0
    %373 = vmatpush1.msra.mxu0 0.0
    %374 = vmatprep.subr.mxu0 0.0
    %375 = vmatpush1.msra.mxu0 0.0
    %376 = vmatprep.subr.mxu0 0.0
    %377 = vmatpush1.msra.mxu0 %v337
    %378 = vmatprep.subr.mxu0 0.0
    %379 = vmatpush1.msra.mxu0 %v335
    %380 = vmatprep.subr.mxu0 0.0
    %381 = vmatpush1.msra.mxu0 %v333
    %382 = vmatprep.subr.mxu0 0.0
    %383 = vmatpush2.msra.mxu0 0.0
    %384 = vmatprep.subr.mxu0 0.0
    %385 = vmatpush2.msra.mxu0 0.0
    %386 = vmatprep.subr.mxu0 0.0
    %387 = vmatpush2.msra.mxu0 0.0
    %388 = vmatprep.subr.mxu0 0.0
    %389 = vmatpush2.msra.mxu0 0.0
    %390 = vmatprep.subr.mxu0 0.0
    %391 = vmatpush2.msra.mxu0 0.0
    %392 = vmatprep.subr.mxu0 0.0
    %393 = vmatpush2.msra.mxu0 0.0
    %394 = vmatprep.subr.mxu0 0.0
    %395 = vmatpush2.msra.mxu0 0.0
    %396 = vmatprep.subr.mxu0 0.0
    %397 = vmatpush2.msra.mxu0 0.0
    %398 = vmatprep.subr.mxu0 0.0
    %399 = vmatpush2.msra.mxu0 0.0
    %400 = vmatprep.subr.mxu0 0.0
    %401 = vmatpush2.msra.mxu0 0.0
    %402 = vmatprep.subr.mxu0 0.0
    %403 = vmatpush2.msra.mxu0 0.0
    %404 = vmatprep.subr.mxu0 0.0
    %405 = vmatpush2.msra.mxu0 0.0
    %406 = vmatprep.subr.mxu0 0.0
    %407 = vmatpush2.msra.mxu0 0.0
    %408 = vmatprep.subr.mxu0 0.0
    %409 = vmatpush2.msra.mxu0 0.0
    %410 = vmatprep.subr.mxu0 0.0
    %411 = vmatpush2.msra.mxu0 0.0
    %412 = vmatprep.subr.mxu0 0.0
    %413 = vmatpush2.msra.mxu0 0.0
    %414 = vmatprep.mubr.f32.mxu0 0.0
    %415 = vmatmul.mubr.f32.gmra.mxu0 %v342
    %v416 = vpop.f32.mrf.mxu0
    %v417 = vadd.f32 0.0, %v416
    %v418 = vpop.f32.mrf.mxu0
    %419 = vmatprep.mubr.f32.mxu0 0.0
    %420 = vmatmul.mubr.f32.gmra.mxu0 %v345
    %v421 = vpop.f32.mrf.mxu0
    %v422 = vadd.f32 0.0, %v421
    %v423 = vpop.f32.mrf.mxu0
    %424 = vmatprep.mubr.f32.mxu0 0.0
    %425 = vmatmul.mubr.f32.gmra.mxu0 %v348
    %v426 = vpop.f32.mrf.mxu0
    %v427 = vadd.f32 0.0, %v426
    %v428 = vpop.f32.mrf.mxu0
    %429 = vdwg.mxu0
    %v430 = vadd.f32 %v326, %v417
    %v431 = vadd.f32 %v327, %v422
    %v432 = vadd.f32 %v328, %v427
    %433 = vrot.lane.b32.xlu0 %v137, 64
    %v434 = vpop.permute.xlu0 %433
    %435 = vrot.lane.b32.xlu0 %v142, 64
    %v436 = vpop.permute.xlu0 %435
    %437 = vrot.lane.b32.xlu0 %v147, 64
    %v438 = vpop.permute.xlu0 %437
    %v443 = vsel %vm236, %v45, 0
    %v446 = vsel %vm236, %v46, 0
    %v449 = vsel %vm236, %v47, 0
    %451 = vmatprep.subr.mxu0 0.0
    %452 = vmatpush1.msra.mxu0 0.0
    %453 = vmatprep.subr.mxu0 0.0
    %454 = vmatpush1.msra.mxu0 0.0
    %455 = vmatprep.subr.mxu0 0.0
    %456 = vmatpush1.msra.mxu0 0.0
    %457 = vmatprep.subr.mxu0 0.0
    %458 = vmatpush1.msra.mxu0 0.0
    %459 = vmatprep.subr.mxu0 0.0
    %460 = vmatpush1.msra.mxu0 0.0
    %461 = vmatprep.subr.mxu0 0.0
    %462 = vmatpush1.msra.mxu0 0.0
    %463 = vmatprep.subr.mxu0 0.0
    %464 = vmatpush1.msra.mxu0 0.0
    %465 = vmatprep.subr.mxu0 0.0
    %466 = vmatpush1.msra.mxu0 0.0
    %467 = vmatprep.subr.mxu0 0.0
    %468 = vmatpush1.msra.mxu0 0.0
    %469 = vmatprep.subr.mxu0 0.0
    %470 = vmatpush1.msra.mxu0 0.0
    %471 = vmatprep.subr.mxu0 0.0
    %472 = vmatpush1.msra.mxu0 0.0
    %473 = vmatprep.subr.mxu0 0.0
    %474 = vmatpush1.msra.mxu0 0.0
    %475 = vmatprep.subr.mxu0 0.0
    %476 = vmatpush1.msra.mxu0 0.0
    %477 = vmatprep.subr.mxu0 0.0
    %478 = vmatpush1.msra.mxu0 %v438
    %479 = vmatprep.subr.mxu0 0.0
    %480 = vmatpush1.msra.mxu0 %v436
    %481 = vmatprep.subr.mxu0 0.0
    %482 = vmatpush1.msra.mxu0 %v434
    %483 = vmatprep.subr.mxu0 0.0
    %484 = vmatpush2.msra.mxu0 0.0
    %485 = vmatprep.subr.mxu0 0.0
    %486 = vmatpush2.msra.mxu0 0.0
    %487 = vmatprep.subr.mxu0 0.0
    %488 = vmatpush2.msra.mxu0 0.0
    %489 = vmatprep.subr.mxu0 0.0
    %490 = vmatpush2.msra.mxu0 0.0
    %491 = vmatprep.subr.mxu0 0.0
    %492 = vmatpush2.msra.mxu0 0.0
    %493 = vmatprep.subr.mxu0 0.0
    %494 = vmatpush2.msra.mxu0 0.0
    %495 = vmatprep.subr.mxu0 0.0
    %496 = vmatpush2.msra.mxu0 0.0
    %497 = vmatprep.subr.mxu0 0.0
    %498 = vmatpush2.msra.mxu0 0.0
    %499 = vmatprep.subr.mxu0 0.0
    %500 = vmatpush2.msra.mxu0 0.0
    %501 = vmatprep.subr.mxu0 0.0
    %502 = vmatpush2.msra.mxu0 0.0
    %503 = vmatprep.subr.mxu0 0.0
    %504 = vmatpush2.msra.mxu0 0.0
    %505 = vmatprep.subr.mxu0 0.0
    %506 = vmatpush2.msra.mxu0 0.0
    %507 = vmatprep.subr.mxu0 0.0
    %508 = vmatpush2.msra.mxu0 0.0
    %509 = vmatprep.subr.mxu0 0.0
    %510 = vmatpush2.msra.mxu0 0.0
    %511 = vmatprep.subr.mxu0 0.0
    %512 = vmatpush2.msra.mxu0 0.0
    %513 = vmatprep.subr.mxu0 0.0
    %514 = vmatpush2.msra.mxu0 0.0
    %515 = vmatprep.mubr.f32.mxu0 0.0
    %516 = vmatmul.mubr.f32.gmra.mxu0 %v443
    %v517 = vpop.f32.mrf.mxu0
    %v518 = vadd.f32 0.0, %v517
    %v519 = vpop.f32.mrf.mxu0
    %520 = vmatprep.mubr.f32.mxu0 0.0
    %521 = vmatmul.mubr.f32.gmra.mxu0 %v446
    %v522 = vpop.f32.mrf.mxu0
    %v523 = vadd.f32 0.0, %v522
    %v524 = vpop.f32.mrf.mxu0
    %525 = vmatprep.mubr.f32.mxu0 0.0
    %526 = vmatmul.mubr.f32.gmra.mxu0 %v449
    %v527 = vpop.f32.mrf.mxu0
    %v528 = vadd.f32 0.0, %v527
    %v529 = vpop.f32.mrf.mxu0
    %530 = vdwg.mxu0
    %v531 = vadd.f32 %v430, %v518
    %v532 = vadd.f32 %v431, %v523
    %v533 = vadd.f32 %v432, %v528
    %v534 = vmul.f32 %v531, %v531
    %v535 = vmul.f32 %v532, %v532
    %v536 = vmul.f32 %v533, %v533
    %vm537 = vcmask 261120
    %v538 = vsel %vm537, %v534, 0.0
    %539 = vadd.xlane.f32.xlu0 %v538
    %v540 = vpop.xlane.xlu0 %539
    %v541 = vsel %vm537, %v535, 0.0
    %542 = vadd.xlane.f32.xlu0 %v541
    %v543 = vpop.xlane.xlu0 %542
    %v544 = vsel %vm537, %v536, 0.0
    %545 = vadd.xlane.f32.xlu0 %v544
    %v546 = vpop.xlane.xlu0 %545
    %v547 = vmax.f32 %v540, 1e-24
    %v548 = vmax.f32 %v543, 1e-24
    %v549 = vmax.f32 %v546, 1e-24
    %v550 = vrsqrt.pop %v547
    %v551 = vrsqrt.pop %v548
    %v552 = vrsqrt.pop %v549
    %v553 = vmul.f32 %v531, %v550
    %v554 = vmul.f32 %v532, %v551
    %v555 = vmul.f32 %v533, %v552
    %v556 = vmax.f32 %v553, 0.0
    %v557 = vmax.f32 %v554, 0.0
    %v558 = vmax.f32 %v555, 0.0
    %v559 = vld [vmem:[%s6] sm:$0xff]
    %v560 = vld [vmem:[%s6 + $0x8] sm:$0xff]
    %v561 = vld [vmem:[%s6 + $0x10] sm:$0xff]
    %v562 = vld [vmem:[%s6 + $0x18] sm:$0xff]
    %v563 = vld [vmem:[%s7] sm:$0x1]
    %v564 = vld [vmem:[%s8] sm:$0xff]
    %v565 = vld [vmem:[%s8 + $0x8] sm:$0xff]
    %v566 = vld [vmem:[%s8 + $0x10] sm:$0xff]
    %v567 = vld [vmem:[%s8 + $0x18] sm:$0xff]
    %v568 = vld [vmem:[%s9] sm:$0x1]
    %v570 = vlaneseq
    %v571 = vshrl.u32 %v570, 7
    %v572 = vsub.s32 0, %v571
    %v573 = vrot.slane %v563, %v572
    %v576 = vsel %vm537, %v556, 0
    %v579 = vsel %vm537, %v557, 0
    %v582 = vsel %vm537, %v558, 0
    %584 = vmatprep.subr.mxu0 0.0
    %585 = vmatpush1.msra.mxu0 0.0
    %586 = vmatprep.subr.mxu0 0.0
    %587 = vmatpush1.msra.mxu0 0.0
    %588 = vmatprep.subr.mxu0 0.0
    %589 = vmatpush1.msra.mxu0 0.0
    %590 = vmatprep.subr.mxu0 0.0
    %591 = vmatpush1.msra.mxu0 0.0
    %592 = vmatprep.subr.mxu0 0.0
    %593 = vmatpush1.msra.mxu0 0.0
    %594 = vmatprep.subr.mxu0 0.0
    %595 = vmatpush1.msra.mxu0 0.0
    %596 = vmatprep.subr.mxu0 0.0
    %597 = vmatpush1.msra.mxu0 0.0
    %598 = vmatprep.subr.mxu0 0.0
    %599 = vmatpush1.msra.mxu0 0.0
    %600 = vmatprep.subr.mxu0 0.0
    %601 = vmatpush1.msra.mxu0 0.0
    %602 = vmatprep.subr.mxu0 0.0
    %603 = vmatpush1.msra.mxu0 0.0
    %604 = vmatprep.subr.mxu0 0.0
    %605 = vmatpush1.msra.mxu0 0.0
    %606 = vmatprep.subr.mxu0 0.0
    %607 = vmatpush1.msra.mxu0 0.0
    %608 = vmatprep.subr.mxu0 0.0
    %609 = vmatpush1.msra.mxu0 %v562
    %610 = vmatprep.subr.mxu0 0.0
    %611 = vmatpush1.msra.mxu0 %v561
    %612 = vmatprep.subr.mxu0 0.0
    %613 = vmatpush1.msra.mxu0 %v560
    %614 = vmatprep.subr.mxu0 0.0
    %615 = vmatpush1.msra.mxu0 %v559
    %616 = vmatprep.subr.mxu0 0.0
    %617 = vmatpush2.msra.mxu0 0.0
    %618 = vmatprep.subr.mxu0 0.0
    %619 = vmatpush2.msra.mxu0 0.0
    %620 = vmatprep.subr.mxu0 0.0
    %621 = vmatpush2.msra.mxu0 0.0
    %622 = vmatprep.subr.mxu0 0.0
    %623 = vmatpush2.msra.mxu0 0.0
    %624 = vmatprep.subr.mxu0 0.0
    %625 = vmatpush2.msra.mxu0 0.0
    %626 = vmatprep.subr.mxu0 0.0
    %627 = vmatpush2.msra.mxu0 0.0
    %628 = vmatprep.subr.mxu0 0.0
    %629 = vmatpush2.msra.mxu0 0.0
    %630 = vmatprep.subr.mxu0 0.0
    %631 = vmatpush2.msra.mxu0 0.0
    %632 = vmatprep.subr.mxu0 0.0
    %633 = vmatpush2.msra.mxu0 0.0
    %634 = vmatprep.subr.mxu0 0.0
    %635 = vmatpush2.msra.mxu0 0.0
    %636 = vmatprep.subr.mxu0 0.0
    %637 = vmatpush2.msra.mxu0 0.0
    %638 = vmatprep.subr.mxu0 0.0
    %639 = vmatpush2.msra.mxu0 0.0
    %640 = vmatprep.subr.mxu0 0.0
    %641 = vmatpush2.msra.mxu0 0.0
    %642 = vmatprep.subr.mxu0 0.0
    %643 = vmatpush2.msra.mxu0 0.0
    %644 = vmatprep.subr.mxu0 0.0
    %645 = vmatpush2.msra.mxu0 0.0
    %646 = vmatprep.subr.mxu0 0.0
    %647 = vmatpush2.msra.mxu0 0.0
    %648 = vmatprep.mubr.f32.mxu0 0.0
    %649 = vmatmul.mubr.f32.gmra.mxu0 %v576
    %v650 = vpop.f32.mrf.mxu0
    %v651 = vadd.f32 %v573, %v650
    %v652 = vpop.f32.mrf.mxu0
    %653 = vmatprep.mubr.f32.mxu0 0.0
    %654 = vmatmul.mubr.f32.gmra.mxu0 %v579
    %v655 = vpop.f32.mrf.mxu0
    %v656 = vadd.f32 %v573, %v655
    %v657 = vpop.f32.mrf.mxu0
    %658 = vmatprep.mubr.f32.mxu0 0.0
    %659 = vmatmul.mubr.f32.gmra.mxu0 %v582
    %v660 = vpop.f32.mrf.mxu0
    %v661 = vadd.f32 %v573, %v660
    %v662 = vpop.f32.mrf.mxu0
    %663 = vdwg.mxu0
    %v665 = vlaneseq
    %v666 = vshrl.u32 %v665, 7
    %v667 = vsub.s32 0, %v666
    %v668 = vrot.slane %v568, %v667
    %670 = vmatprep.subr.mxu0 0.0
    %671 = vmatpush1.msra.mxu0 0.0
    %672 = vmatprep.subr.mxu0 0.0
    %673 = vmatpush1.msra.mxu0 0.0
    %674 = vmatprep.subr.mxu0 0.0
    %675 = vmatpush1.msra.mxu0 0.0
    %676 = vmatprep.subr.mxu0 0.0
    %677 = vmatpush1.msra.mxu0 0.0
    %678 = vmatprep.subr.mxu0 0.0
    %679 = vmatpush1.msra.mxu0 0.0
    %680 = vmatprep.subr.mxu0 0.0
    %681 = vmatpush1.msra.mxu0 0.0
    %682 = vmatprep.subr.mxu0 0.0
    %683 = vmatpush1.msra.mxu0 0.0
    %684 = vmatprep.subr.mxu0 0.0
    %685 = vmatpush1.msra.mxu0 0.0
    %686 = vmatprep.subr.mxu0 0.0
    %687 = vmatpush1.msra.mxu0 0.0
    %688 = vmatprep.subr.mxu0 0.0
    %689 = vmatpush1.msra.mxu0 0.0
    %690 = vmatprep.subr.mxu0 0.0
    %691 = vmatpush1.msra.mxu0 0.0
    %692 = vmatprep.subr.mxu0 0.0
    %693 = vmatpush1.msra.mxu0 0.0
    %694 = vmatprep.subr.mxu0 0.0
    %695 = vmatpush1.msra.mxu0 %v567
    %696 = vmatprep.subr.mxu0 0.0
    %697 = vmatpush1.msra.mxu0 %v566
    %698 = vmatprep.subr.mxu0 0.0
    %699 = vmatpush1.msra.mxu0 %v565
    %700 = vmatprep.subr.mxu0 0.0
    %701 = vmatpush1.msra.mxu0 %v564
    %702 = vmatprep.subr.mxu0 0.0
    %703 = vmatpush2.msra.mxu0 0.0
    %704 = vmatprep.subr.mxu0 0.0
    %705 = vmatpush2.msra.mxu0 0.0
    %706 = vmatprep.subr.mxu0 0.0
    %707 = vmatpush2.msra.mxu0 0.0
    %708 = vmatprep.subr.mxu0 0.0
    %709 = vmatpush2.msra.mxu0 0.0
    %710 = vmatprep.subr.mxu0 0.0
    %711 = vmatpush2.msra.mxu0 0.0
    %712 = vmatprep.subr.mxu0 0.0
    %713 = vmatpush2.msra.mxu0 0.0
    %714 = vmatprep.subr.mxu0 0.0
    %715 = vmatpush2.msra.mxu0 0.0
    %716 = vmatprep.subr.mxu0 0.0
    %717 = vmatpush2.msra.mxu0 0.0
    %718 = vmatprep.subr.mxu0 0.0
    %719 = vmatpush2.msra.mxu0 0.0
    %720 = vmatprep.subr.mxu0 0.0
    %721 = vmatpush2.msra.mxu0 0.0
    %722 = vmatprep.subr.mxu0 0.0
    %723 = vmatpush2.msra.mxu0 0.0
    %724 = vmatprep.subr.mxu0 0.0
    %725 = vmatpush2.msra.mxu0 0.0
    %726 = vmatprep.subr.mxu0 0.0
    %727 = vmatpush2.msra.mxu0 0.0
    %728 = vmatprep.subr.mxu0 0.0
    %729 = vmatpush2.msra.mxu0 0.0
    %730 = vmatprep.subr.mxu0 0.0
    %731 = vmatpush2.msra.mxu0 0.0
    %732 = vmatprep.subr.mxu0 0.0
    %733 = vmatpush2.msra.mxu0 0.0
    %734 = vmatprep.mubr.f32.mxu0 0.0
    %735 = vmatmul.mubr.f32.gmra.mxu0 %v576
    %v736 = vpop.f32.mrf.mxu0
    %v737 = vadd.f32 %v668, %v736
    %v738 = vpop.f32.mrf.mxu0
    %739 = vmatprep.mubr.f32.mxu0 0.0
    %740 = vmatmul.mubr.f32.gmra.mxu0 %v579
    %v741 = vpop.f32.mrf.mxu0
    %v742 = vadd.f32 %v668, %v741
    %v743 = vpop.f32.mrf.mxu0
    %744 = vmatprep.mubr.f32.mxu0 0.0
    %745 = vmatmul.mubr.f32.gmra.mxu0 %v582
    %v746 = vpop.f32.mrf.mxu0
    %v747 = vadd.f32 %v668, %v746
    %v748 = vpop.f32.mrf.mxu0
    %749 = vdwg.mxu0
    %750 = vmatprep.subr.mxu0 0.0
    %751 = vmatpush1.msra.mxu0 0.0
    %752 = vmatprep.subr.mxu0 0.0
    %753 = vmatpush1.msra.mxu0 0.0
    %754 = vmatprep.subr.mxu0 0.0
    %755 = vmatpush1.msra.mxu0 0.0
    %756 = vmatprep.subr.mxu0 0.0
    %757 = vmatpush1.msra.mxu0 0.0
    %758 = vmatprep.subr.mxu0 0.0
    %759 = vmatpush1.msra.mxu0 0.0
    %760 = vmatprep.subr.mxu0 0.0
    %761 = vmatpush1.msra.mxu0 0.0
    %762 = vmatprep.subr.mxu0 0.0
    %763 = vmatpush1.msra.mxu0 0.0
    %764 = vmatprep.subr.mxu0 0.0
    %765 = vmatpush1.msra.mxu0 0.0
    %766 = vmatprep.subr.mxu0 0.0
    %767 = vmatpush1.msra.mxu0 0.0
    %768 = vmatprep.subr.mxu0 0.0
    %769 = vmatpush1.msra.mxu0 0.0
    %770 = vmatprep.subr.mxu0 0.0
    %771 = vmatpush1.msra.mxu0 0.0
    %772 = vmatprep.subr.mxu0 0.0
    %773 = vmatpush1.msra.mxu0 0.0
    %774 = vmatprep.subr.mxu0 0.0
    %775 = vmatpush1.msra.mxu0 0.0
    %776 = vmatprep.subr.mxu0 0.0
    %777 = vmatpush1.msra.mxu0 %v661
    %778 = vmatprep.subr.mxu0 0.0
    %779 = vmatpush1.msra.mxu0 %v656
    %780 = vmatprep.subr.mxu0 0.0
    %781 = vmatpush1.msra.mxu0 %v651
    %782 = vmatprep.subr.mxu0 0.0
    %783 = vmatpush2.msra.mxu0 0.0
    %784 = vmatprep.subr.mxu0 0.0
    %785 = vmatpush2.msra.mxu0 0.0
    %786 = vmatprep.subr.mxu0 0.0
    %787 = vmatpush2.msra.mxu0 0.0
    %788 = vmatprep.subr.mxu0 0.0
    %789 = vmatpush2.msra.mxu0 0.0
    %790 = vmatprep.subr.mxu0 0.0
    %791 = vmatpush2.msra.mxu0 0.0
    %792 = vmatprep.subr.mxu0 0.0
    %793 = vmatpush2.msra.mxu0 0.0
    %794 = vmatprep.subr.mxu0 0.0
    %795 = vmatpush2.msra.mxu0 0.0
    %796 = vmatprep.subr.mxu0 0.0
    %797 = vmatpush2.msra.mxu0 0.0
    %798 = vmatprep.subr.mxu0 0.0
    %799 = vmatpush2.msra.mxu0 0.0
    %800 = vmatprep.subr.mxu0 0.0
    %801 = vmatpush2.msra.mxu0 0.0
    %802 = vmatprep.subr.mxu0 0.0
    %803 = vmatpush2.msra.mxu0 0.0
    %804 = vmatprep.subr.mxu0 0.0
    %805 = vmatpush2.msra.mxu0 0.0
    %806 = vmatprep.subr.mxu0 0.0
    %807 = vmatpush2.msra.mxu0 0.0
    %808 = vmatprep.subr.mxu0 0.0
    %809 = vmatpush2.msra.mxu0 0.0
    %810 = vmatprep.subr.mxu0 0.0
    %811 = vmatpush2.msra.mxu0 0.0
    %812 = vmatprep.subr.mxu0 0.0
    %813 = vmatpush2.msra.mxu0 0.0
    %814 = vmatprep.mubr.f32.mxu0 0.0
    %815 = vmatmul.mubr.f32.gmra.mxu0 %v238
    %v816 = vpop.f32.mrf.mxu0
    %v817 = vadd.f32 0.0, %v816
    %v818 = vpop.f32.mrf.mxu0
    %819 = vmatprep.mubr.f32.mxu0 0.0
    %820 = vmatmul.mubr.f32.gmra.mxu0 %v241
    %v821 = vpop.f32.mrf.mxu0
    %v822 = vadd.f32 0.0, %v821
    %v823 = vpop.f32.mrf.mxu0
    %824 = vmatprep.mubr.f32.mxu0 0.0
    %825 = vmatmul.mubr.f32.gmra.mxu0 %v244
    %v826 = vpop.f32.mrf.mxu0
    %v827 = vadd.f32 0.0, %v826
    %v828 = vpop.f32.mrf.mxu0
    %829 = vdwg.mxu0
    %v830 = vadd.f32 %v737, %v817
    %v831 = vadd.f32 %v742, %v822
    %v832 = vadd.f32 %v747, %v827
    %836 = vrot.lane.b32.xlu0 %v651, 96
    %v837 = vpop.permute.xlu0 %836
    %838 = vrot.lane.b32.xlu0 %v656, 96
    %v839 = vpop.permute.xlu0 %838
    %840 = vrot.lane.b32.xlu0 %v661, 96
    %v841 = vpop.permute.xlu0 %840
    %845 = vmatprep.subr.mxu0 0.0
    %846 = vmatpush1.msra.mxu0 0.0
    %847 = vmatprep.subr.mxu0 0.0
    %848 = vmatpush1.msra.mxu0 0.0
    %849 = vmatprep.subr.mxu0 0.0
    %850 = vmatpush1.msra.mxu0 0.0
    %851 = vmatprep.subr.mxu0 0.0
    %852 = vmatpush1.msra.mxu0 0.0
    %853 = vmatprep.subr.mxu0 0.0
    %854 = vmatpush1.msra.mxu0 0.0
    %855 = vmatprep.subr.mxu0 0.0
    %856 = vmatpush1.msra.mxu0 0.0
    %857 = vmatprep.subr.mxu0 0.0
    %858 = vmatpush1.msra.mxu0 0.0
    %859 = vmatprep.subr.mxu0 0.0
    %860 = vmatpush1.msra.mxu0 0.0
    %861 = vmatprep.subr.mxu0 0.0
    %862 = vmatpush1.msra.mxu0 0.0
    %863 = vmatprep.subr.mxu0 0.0
    %864 = vmatpush1.msra.mxu0 0.0
    %865 = vmatprep.subr.mxu0 0.0
    %866 = vmatpush1.msra.mxu0 0.0
    %867 = vmatprep.subr.mxu0 0.0
    %868 = vmatpush1.msra.mxu0 0.0
    %869 = vmatprep.subr.mxu0 0.0
    %870 = vmatpush1.msra.mxu0 0.0
    %871 = vmatprep.subr.mxu0 0.0
    %872 = vmatpush1.msra.mxu0 %v841
    %873 = vmatprep.subr.mxu0 0.0
    %874 = vmatpush1.msra.mxu0 %v839
    %875 = vmatprep.subr.mxu0 0.0
    %876 = vmatpush1.msra.mxu0 %v837
    %877 = vmatprep.subr.mxu0 0.0
    %878 = vmatpush2.msra.mxu0 0.0
    %879 = vmatprep.subr.mxu0 0.0
    %880 = vmatpush2.msra.mxu0 0.0
    %881 = vmatprep.subr.mxu0 0.0
    %882 = vmatpush2.msra.mxu0 0.0
    %883 = vmatprep.subr.mxu0 0.0
    %884 = vmatpush2.msra.mxu0 0.0
    %885 = vmatprep.subr.mxu0 0.0
    %886 = vmatpush2.msra.mxu0 0.0
    %887 = vmatprep.subr.mxu0 0.0
    %888 = vmatpush2.msra.mxu0 0.0
    %889 = vmatprep.subr.mxu0 0.0
    %890 = vmatpush2.msra.mxu0 0.0
    %891 = vmatprep.subr.mxu0 0.0
    %892 = vmatpush2.msra.mxu0 0.0
    %893 = vmatprep.subr.mxu0 0.0
    %894 = vmatpush2.msra.mxu0 0.0
    %895 = vmatprep.subr.mxu0 0.0
    %896 = vmatpush2.msra.mxu0 0.0
    %897 = vmatprep.subr.mxu0 0.0
    %898 = vmatpush2.msra.mxu0 0.0
    %899 = vmatprep.subr.mxu0 0.0
    %900 = vmatpush2.msra.mxu0 0.0
    %901 = vmatprep.subr.mxu0 0.0
    %902 = vmatpush2.msra.mxu0 0.0
    %903 = vmatprep.subr.mxu0 0.0
    %904 = vmatpush2.msra.mxu0 0.0
    %905 = vmatprep.subr.mxu0 0.0
    %906 = vmatpush2.msra.mxu0 0.0
    %907 = vmatprep.subr.mxu0 0.0
    %908 = vmatpush2.msra.mxu0 0.0
    %909 = vmatprep.mubr.f32.mxu0 0.0
    %910 = vmatmul.mubr.f32.gmra.mxu0 %v342
    %v911 = vpop.f32.mrf.mxu0
    %v912 = vadd.f32 0.0, %v911
    %v913 = vpop.f32.mrf.mxu0
    %914 = vmatprep.mubr.f32.mxu0 0.0
    %915 = vmatmul.mubr.f32.gmra.mxu0 %v345
    %v916 = vpop.f32.mrf.mxu0
    %v917 = vadd.f32 0.0, %v916
    %v918 = vpop.f32.mrf.mxu0
    %919 = vmatprep.mubr.f32.mxu0 0.0
    %920 = vmatmul.mubr.f32.gmra.mxu0 %v348
    %v921 = vpop.f32.mrf.mxu0
    %v922 = vadd.f32 0.0, %v921
    %v923 = vpop.f32.mrf.mxu0
    %924 = vdwg.mxu0
    %v925 = vadd.f32 %v830, %v912
    %v926 = vadd.f32 %v831, %v917
    %v927 = vadd.f32 %v832, %v922
    %928 = vrot.lane.b32.xlu0 %v651, 64
    %v929 = vpop.permute.xlu0 %928
    %930 = vrot.lane.b32.xlu0 %v656, 64
    %v931 = vpop.permute.xlu0 %930
    %932 = vrot.lane.b32.xlu0 %v661, 64
    %v933 = vpop.permute.xlu0 %932
    %937 = vmatprep.subr.mxu0 0.0
    %938 = vmatpush1.msra.mxu0 0.0
    %939 = vmatprep.subr.mxu0 0.0
    %940 = vmatpush1.msra.mxu0 0.0
    %941 = vmatprep.subr.mxu0 0.0
    %942 = vmatpush1.msra.mxu0 0.0
    %943 = vmatprep.subr.mxu0 0.0
    %944 = vmatpush1.msra.mxu0 0.0
    %945 = vmatprep.subr.mxu0 0.0
    %946 = vmatpush1.msra.mxu0 0.0
    %947 = vmatprep.subr.mxu0 0.0
    %948 = vmatpush1.msra.mxu0 0.0
    %949 = vmatprep.subr.mxu0 0.0
    %950 = vmatpush1.msra.mxu0 0.0
    %951 = vmatprep.subr.mxu0 0.0
    %952 = vmatpush1.msra.mxu0 0.0
    %953 = vmatprep.subr.mxu0 0.0
    %954 = vmatpush1.msra.mxu0 0.0
    %955 = vmatprep.subr.mxu0 0.0
    %956 = vmatpush1.msra.mxu0 0.0
    %957 = vmatprep.subr.mxu0 0.0
    %958 = vmatpush1.msra.mxu0 0.0
    %959 = vmatprep.subr.mxu0 0.0
    %960 = vmatpush1.msra.mxu0 0.0
    %961 = vmatprep.subr.mxu0 0.0
    %962 = vmatpush1.msra.mxu0 0.0
    %963 = vmatprep.subr.mxu0 0.0
    %964 = vmatpush1.msra.mxu0 %v933
    %965 = vmatprep.subr.mxu0 0.0
    %966 = vmatpush1.msra.mxu0 %v931
    %967 = vmatprep.subr.mxu0 0.0
    %968 = vmatpush1.msra.mxu0 %v929
    %969 = vmatprep.subr.mxu0 0.0
    %970 = vmatpush2.msra.mxu0 0.0
    %971 = vmatprep.subr.mxu0 0.0
    %972 = vmatpush2.msra.mxu0 0.0
    %973 = vmatprep.subr.mxu0 0.0
    %974 = vmatpush2.msra.mxu0 0.0
    %975 = vmatprep.subr.mxu0 0.0
    %976 = vmatpush2.msra.mxu0 0.0
    %977 = vmatprep.subr.mxu0 0.0
    %978 = vmatpush2.msra.mxu0 0.0
    %979 = vmatprep.subr.mxu0 0.0
    %980 = vmatpush2.msra.mxu0 0.0
    %981 = vmatprep.subr.mxu0 0.0
    %982 = vmatpush2.msra.mxu0 0.0
    %983 = vmatprep.subr.mxu0 0.0
    %984 = vmatpush2.msra.mxu0 0.0
    %985 = vmatprep.subr.mxu0 0.0
    %986 = vmatpush2.msra.mxu0 0.0
    %987 = vmatprep.subr.mxu0 0.0
    %988 = vmatpush2.msra.mxu0 0.0
    %989 = vmatprep.subr.mxu0 0.0
    %990 = vmatpush2.msra.mxu0 0.0
    %991 = vmatprep.subr.mxu0 0.0
    %992 = vmatpush2.msra.mxu0 0.0
    %993 = vmatprep.subr.mxu0 0.0
    %994 = vmatpush2.msra.mxu0 0.0
    %995 = vmatprep.subr.mxu0 0.0
    %996 = vmatpush2.msra.mxu0 0.0
    %997 = vmatprep.subr.mxu0 0.0
    %998 = vmatpush2.msra.mxu0 0.0
    %999 = vmatprep.subr.mxu0 0.0
    %1000 = vmatpush2.msra.mxu0 0.0
    %1001 = vmatprep.mubr.f32.mxu0 0.0
    %1002 = vmatmul.mubr.f32.gmra.mxu0 %v443
    %v1003 = vpop.f32.mrf.mxu0
    %v1004 = vadd.f32 0.0, %v1003
    %v1005 = vpop.f32.mrf.mxu0
    %1006 = vmatprep.mubr.f32.mxu0 0.0
    %1007 = vmatmul.mubr.f32.gmra.mxu0 %v446
    %v1008 = vpop.f32.mrf.mxu0
    %v1009 = vadd.f32 0.0, %v1008
    %v1010 = vpop.f32.mrf.mxu0
    %1011 = vmatprep.mubr.f32.mxu0 0.0
    %1012 = vmatmul.mubr.f32.gmra.mxu0 %v449
    %v1013 = vpop.f32.mrf.mxu0
    %v1014 = vadd.f32 0.0, %v1013
    %v1015 = vpop.f32.mrf.mxu0
    %1016 = vdwg.mxu0
    %v1017 = vadd.f32 %v925, %v1004
    %v1018 = vadd.f32 %v926, %v1009
    %v1019 = vadd.f32 %v927, %v1014
    %1020 = vst.msk [vmem:[#allocation2] sm:$0xff] %vm537, %v1017
    %1021 = vst.msk [vmem:[#allocation2 + $0x8] sm:$0xff] %vm537, %v1018
    %1022 = vst.msk [vmem:[#allocation2 + $0x10] sm:$0xff] %vm537, %v1019
    // Predicated region
    $region42: #{metrical_gnn_forward.1} parent=1 // pred_check
      _
    $region43: #{metrical_gnn_forward.1} parent=1 // pred_check_branch
      %1024 = sbr.rel (0) target = $region45
    $region44: #{metrical_gnn_forward.1} parent=1 // pred_region
      %s1026 = ssub.s32 384, 384
      %1027 = vsyncadd [#allocation3], %s1026
      %s1028 = sshll.u32 [#allocation2], 4
      %s1029 = int_to_ptr.vmem [resolvable:$true] %s1028
      %1034 = dma.vmem_to_hbm [thread:$0]  %s1029, 384, %s10, [#allocation3], 128, 128, 8
    $region45: #{metrical_gnn_forward.1} parent=1 // pred_fallthru
      _
    // Predicated region
    $region46: #{metrical_gnn_forward.1} parent=1 // pred_check
      _
    $region47: #{metrical_gnn_forward.1} parent=1 // pred_check_branch
      %1036 = sbr.rel (0) target = $region49
    $region48: #{metrical_gnn_forward.1} parent=1 // pred_region
      %1037 = dma.done [#allocation3], 384
    $region49: #{metrical_gnn_forward.1} parent=1 // pred_fallthru
      _
    %1038 = vsyncpa [#allocation3], 1

</llo_original>
